<compile_context>
chip_gen: v7x
topology: tpu7x:2x2x1
jax: 0.10.0
libtpu: 0.0.40
codegen_flags: <defaults>
</compile_context>

<pallas_src>
import math
from functools import partial

import jax
import jax.numpy as jnp
from jax.experimental import pallas as pl
from jax.experimental.pallas import tpu as pltpu


def _round_up(x: int, m: int) -> int:
    return -(-x // m) * m


def _fold_factor(frame_size: int, embed_dim: int) -> int:
    """Smallest k such that k*frame_size and k*embed_dim are both multiples of 128."""

    def need(x: int) -> int:
        return 128 // math.gcd(x, 128)

    kf, kd = need(frame_size), need(embed_dim)
    k = (kf * kd) // math.gcd(kf, kd)  # lcm; always divides 128
    # Safety cap: keep the resident block-diag weight comfortably small.
    # TODO(synk): for pathological frame_size/embed_dim this cap can drop the
    # exact 128-multiple alignment; acceptable fallback, never hit for
    # power-of-two dims.
    while k > 1 and (k * frame_size) * (k * embed_dim) * 2 > (4 << 20):
        k //= 2
    return k


def _featurizer_kernel(x_ref, w_ref, b_ref, o_ref):
    # x_ref: (tm, KF) f32 folded-frame tile — cast to bf16 here (in-kernel) so
    # the activation stream is read from HBM exactly once, with no pre-pass.
    # w_ref: (KF, KD) bf16 block-diag weights (resident across the grid).
    # b_ref: (1, KD) f32 bias.  MXU matmul with f32 accumulation, bias + GELU
    # in f32, lane-dense (KD % 128 == 0) bf16 store.
    x = x_ref[...].astype(jnp.bfloat16)
    acc = jnp.dot(x, w_ref[...], preferred_element_type=jnp.float32)
    acc = acc + b_ref[...]
    # TODO(synk): torch.nn.GELU defaults to exact erf; the tanh approximation
    # is kept here (and in the pure-JAX reference) for guaranteed Mosaic
    # lowering — switch to approximate=False if exact-erf parity is required.
    o_ref[...] = jax.nn.gelu(acc, approximate=True).astype(o_ref.dtype)


@partial(jax.jit, static_argnames=("frame_size",))
def _speech_featurizer_forward(input_ids, w_blk, b_blk, *, frame_size):
    """[B, T] float32 waveform -> [B, P, D] bf16 features, GELU(frame @ W + b)."""
    B, T = input_ids.shape
    F = frame_size
    KF, KD = w_blk.shape
    k = KF // F
    D = KD // k
    P = T // F
    if P == 0:  # degenerate: waveform shorter than one frame
        return jnp.zeros((B, 0, D), dtype=jnp.bfloat16)

    # Pad the frame count up to a multiple of the fold factor (no-op in the
    # common case).  Activations stay f32; the bf16 cast happens in-kernel.
    Pp = _round_up(P, k)
    x = input_ids if P * F == T else input_ids[:, : P * F]
    if Pp != P:
        x = jnp.pad(x, ((0, 0), (0, (Pp - P) * F)))
    R = (B * Pp) // k
    x = x.reshape(R, KF)  # contiguous reshape: free, no copy

    # Row tile: large enough to amortize the ~0.35us per-grid-step overhead,
    # rounded to 16 (bf16 row packing), and split >= 2 ways when possible so
    # the "parallel" axis spans v7x's two TensorCores.
    tm = max(16, min(1024, _round_up(pl.cdiv(R, 2), 16)))
    # VMEM guard: double-buffered f32 input + bf16 output tiles + resident weight.
    while tm > 16 and 2 * tm * (KF * 4 + KD * 2) + KF * KD * 2 > 24 * 1024 * 1024:
        tm //= 2
    grid = (pl.cdiv(R, tm),)  # ragged final block: edge writes are masked

    cost = pl.CostEstimate(
        flops=2 * R * KF * KD,
        transcendentals=R * KD,
        bytes_accessed=R * KF * 4 + KF * KD * 2 + KD * 4 + R * KD * 2,
    )

    out = pl.pallas_call(
        _featurizer_kernel,
        out_shape=jax.ShapeDtypeStruct((R, KD), jnp.bfloat16),
        grid_spec=pltpu.PrefetchScalarGridSpec(
            num_scalar_prefetch=0,
            grid=grid,
            in_specs=[
                pl.BlockSpec((tm, KF), lambda i: (i, 0)),
                pl.BlockSpec((KF, KD), lambda i: (0, 0)),
                pl.BlockSpec((1, KD), lambda i: (0, 0)),
            ],
            out_specs=pl.BlockSpec((tm, KD), lambda i: (i, 0)),
        ),
        compiler_params=pltpu.CompilerParams(
            # Shards across v7x's two TensorCores whenever grid length >= 2;
            # a no-op on single-TC v5e/v6e.
            dimension_semantics=("parallel",),
        ),
        cost_estimate=cost,
    )(x, w_blk, b_blk)

    # Un-fold: each output row holds k frames' D-wide features concatenated.
    feats = out.reshape(B, Pp // k, k, D).reshape(B, Pp, D)
    return feats[:, :P] if Pp != P else feats


class SpeechBackbonePallas:
    """Concrete Pallas instantiation of SpeechBackbone."""

    def __init__(
        self,
        speech_backbone_id: str,
        speech_augmentation_strategy: str,
        sample_rate: int = 16000,
        frame_size: int = 16,
        embed_dim: int = 32,
        default_audio_len: int = 128,
        key=None,
    ):
        self.identifier = speech_backbone_id
        self.speech_augmentation_strategy = speech_augmentation_strategy
        self.sample_rate = sample_rate
        self.frame_size = frame_size
        self._embed_dim = embed_dim
        self._default_audio_len = default_audio_len

        if key is None:
            key = jax.random.PRNGKey(0)
        k_w, k_b = jax.random.split(key)
        # Deterministic synthetic featurizer parameters.
        self.w = (
            jax.random.normal(k_w, (frame_size, embed_dim), dtype=jnp.float32)
            / jnp.sqrt(jnp.float32(frame_size))
        )
        self.b = 0.01 * jax.random.normal(k_b, (1, embed_dim), dtype=jnp.float32)

        # Fold factor and block-diagonal weight/bias built ONCE here (not per
        # forward call): k depends only on (frame_size, embed_dim).
        self._fold = _fold_factor(frame_size, embed_dim)
        self.w_blk = jnp.kron(
            jnp.eye(self._fold, dtype=jnp.float32), self.w
        ).astype(jnp.bfloat16)
        self.b_blk = jnp.tile(self.b, (1, self._fold)).astype(jnp.float32)

    # TODO(synk): get_fsdp_wrapping_policy has no Pallas/JAX-kernel equivalent
    # (it is a torch.distributed FSDP concern), so it is intentionally omitted.

    def forward(self, input_ids: jnp.ndarray) -> jnp.ndarray:
        """input_ids: [B, T] float32 waveform -> [B, P, D] bf16 frame features."""
        return _speech_featurizer_forward(
            input_ids.astype(jnp.float32),
            self.w_blk,
            self.b_blk,
            frame_size=self.frame_size,
        )

    @property
    def default_image_resolution(self):
        # (channels, "height" = num frames, "width" = frame size) analogue.
        return (1, self._default_audio_len // self.frame_size, self.frame_size)

    @property
    def embed_dim(self) -> int:
        return self._embed_dim

    @property
    def num_patches(self) -> int:
        return self._default_audio_len // self.frame_size

    @property
    def half_precision_dtype(self):
        return jnp.bfloat16


def _reference_forward(backbone: SpeechBackbonePallas, input_ids: jnp.ndarray) -> jnp.ndarray:
    # Mirrors the kernel's numerics: bf16 weights/activations into the matmul,
    # f32 accumulation, f32 bias + GELU (tanh approximation), bf16 output.
    B, T = input_ids.shape
    F, D = backbone.frame_size, backbone.embed_dim
    P = T // F
    x = input_ids[:, : P * F].reshape(B * P, F).astype(jnp.bfloat16)
    w = backbone.w.astype(jnp.bfloat16)
    y = jax.nn.gelu(
        jnp.dot(x, w, preferred_element_type=jnp.float32) + backbone.b,
        approximate=True,
    )
    return y.astype(jnp.bfloat16).reshape(B, P, D)


if __name__ == "__main__":
    key = jax.random.PRNGKey(0)
    k_in, k_params = jax.random.split(key)

    B, T = 2, 128            # batch of 2 short waveforms, 128 samples each
    frame_size, embed_dim = 16, 32

    backbone = SpeechBackbonePallas(
        speech_backbone_id="synthetic-speech-v0",
        speech_augmentation_strategy="none",
        sample_rate=16000,
        frame_size=frame_size,
        embed_dim=embed_dim,
        default_audio_len=T,
        key=k_params,
    )

    input_ids = jax.random.normal(k_in, (B, T), dtype=jnp.float32)

    feats = backbone.forward(input_ids)
    feats = jax.block_until_ready(feats)

    ref = _reference_forward(backbone, input_ids)
    assert feats.shape == (B, T // frame_size, embed_dim), feats.shape
    assert feats.dtype == backbone.half_precision_dtype, feats.dtype
    assert jnp.allclose(
        feats.astype(jnp.float32), ref.astype(jnp.float32), atol=2e-2, rtol=2e-2
    ), "mismatch vs pure-JAX reference"

    print("KERNEL_OK")
</pallas_src>

<mosaic_0001>
module attributes {stable_mosaic.version = 11 : i64} {
  func.func @_featurizer_kernel(%arg0: i32, %arg1: memref<16x128xf32, #tpu.memory_space<vmem>>, %arg2: memref<128x256xbf16, #tpu.memory_space<vmem>>, %arg3: memref<1x256xf32, #tpu.memory_space<vmem>>, %arg4: memref<16x256xbf16, #tpu.memory_space<vmem>>) attributes {dimension_semantics = [#tpu.dimension_semantics<parallel>], iteration_bounds = array<i64: 1>, scalar_prefetch = 0 : i64, scratch_operands = 0 : i64, tpu.core_type = #tpu.core_type<tc>, window_params = [{transform_indices = @transform_0, window_bounds = array<i64: 16, 128>}, {pipeline_mode = #tpu.pipeline_mode<synchronous>, transform_indices = @transform_1, window_bounds = array<i64: 128, 256>}, {pipeline_mode = #tpu.pipeline_mode<synchronous>, transform_indices = @transform_2, window_bounds = array<i64: 1, 256>}, {transform_indices = @transform_3, window_bounds = array<i64: 16, 256>}]} {
    %c0 = arith.constant 0 : index
    %c0_0 = arith.constant 0 : index
    %0 = vector.load %arg1[%c0, %c0_0] : memref<16x128xf32, #tpu.memory_space<vmem>>, vector<16x128xf32>
    %1 = arith.truncf %0 : vector<16x128xf32> to vector<16x128xbf16>
    %c0_1 = arith.constant 0 : index
    %c0_2 = arith.constant 0 : index
    %2 = vector.load %arg2[%c0_1, %c0_2] : memref<128x256xbf16, #tpu.memory_space<vmem>>, vector<128x256xbf16>
    %cst = arith.constant dense<0.000000e+00> : vector<16x256xf32>
    %3 = tpu.matmul %1, %2, %cst {dimension_numbers = #tpu.dot_dimension_numbers<[1], [0], [0], [1], [0, 0, 1, 1], [], []>} : vector<16x128xbf16>, vector<128x256xbf16>, vector<16x256xf32> -> vector<16x256xf32>
    %c0_3 = arith.constant 0 : index
    %c0_4 = arith.constant 0 : index
    %4 = vector.load %arg3[%c0_3, %c0_4] : memref<1x256xf32, #tpu.memory_space<vmem>>, vector<1x256xf32>
    %5 = vector.broadcast %4 : vector<1x256xf32> to vector<16x256xf32>
    %6 = arith.addf %3, %5 : vector<16x256xf32>
    %7 = arith.mulf %6, %6 : vector<16x256xf32>
    %8 = arith.mulf %6, %7 : vector<16x256xf32>
    %cst_5 = arith.constant 4.471500e-02 : f32
    %9 = vector.broadcast %cst_5 : f32 to vector<16x256xf32>
    %10 = arith.mulf %9, %8 : vector<16x256xf32>
    %11 = arith.addf %6, %10 : vector<16x256xf32>
    %cst_6 = arith.constant 0.797884583 : f32
    %12 = vector.broadcast %cst_6 : f32 to vector<16x256xf32>
    %13 = arith.mulf %12, %11 : vector<16x256xf32>
    %14 = math.tanh %13 : vector<16x256xf32>
    %cst_7 = arith.constant 1.000000e+00 : f32
    %15 = vector.broadcast %cst_7 : f32 to vector<16x256xf32>
    %16 = arith.addf %15, %14 : vector<16x256xf32>
    %cst_8 = arith.constant 5.000000e-01 : f32
    %17 = vector.broadcast %cst_8 : f32 to vector<16x256xf32>
    %18 = arith.mulf %17, %16 : vector<16x256xf32>
    %19 = arith.mulf %6, %18 : vector<16x256xf32>
    %20 = arith.truncf %19 : vector<16x256xf32> to vector<16x256xbf16>
    %c0_9 = arith.constant 0 : index
    %c0_10 = arith.constant 0 : index
    %21 = vector.load %arg4[%c0_9, %c0_10] : memref<16x256xbf16, #tpu.memory_space<vmem>>, vector<16x256xbf16>
    tpu.vector_store %arg4[%c0_9, %c0_10], %20 {strides = array<i32>} : memref<16x256xbf16, #tpu.memory_space<vmem>>, vector<16x256xbf16>,
    return
  }
  func.func @transform_0(%arg0: i32) -> (i32, i32) {
    %c0_i32 = arith.constant 0 : i32
    %c0_i32_0 = arith.constant 0 : i32
    return %arg0, %c0_i32 : i32, i32
  }
  func.func @transform_1(%arg0: i32) -> (i32, i32) {
    %c0_i32 = arith.constant 0 : i32
    %c0_i32_0 = arith.constant 0 : i32
    %c0_i32_1 = arith.constant 0 : i32
    return %c0_i32, %c0_i32_0 : i32, i32
  }
  func.func @transform_2(%arg0: i32) -> (i32, i32) {
    %c0_i32 = arith.constant 0 : i32
    %c0_i32_0 = arith.constant 0 : i32
    %c0_i32_1 = arith.constant 0 : i32
    return %c0_i32, %c0_i32_0 : i32, i32
  }
  func.func @transform_3(%arg0: i32) -> (i32, i32) {
    %c0_i32 = arith.constant 0 : i32
    %c0_i32_0 = arith.constant 0 : i32
    return %arg0, %c0_i32 : i32, i32
  }
}

</mosaic_0001>

<llo_original>
// kernel: _speech_featurizer_forward.1
$region0: #{_speech_featurizer_forward.1}
  #allocation0 [shape = 'u32[]', space=smem, size = 0x4, offset = 0x4, fixed_abs, tag = 'smem constant byte address 0x4 - core index']
  #allocation1 [shape = 'u32[144,128]{1,0:T(1,128)}', space=vmem, size = 0x12000, scoped, tag = 'internal scratch']
  %s0 = inlined_call_operand.hbm [shape: f32[2,128], index: 0, kind: input, shape index: {}]
  %s1 = inlined_call_operand.hbm [shape: bf16[128,256], index: 1, kind: input, shape index: {}]
  %s2 = inlined_call_operand.vmem [shape: f32[1,256], index: 2, kind: input, shape index: {}]
  %s3 = inlined_call_operand.vmem [shape: bf16[2,256], index: 3, kind: output, shape index: {}]
  %s4 = sld [smem:[#allocation0]]
  $region60: #{_speech_featurizer_forward.1} parent=0
    _
  %s6 = ssub.s32 1, %s4
  %s7 = scalar_select 0, %s6, %s4
  $region1: #{_speech_featurizer_forward.1} parent=0
    #allocation2 [shape = 'u8[8192]{0}', space=vmem, size = 0x2000, scoped, tag = 'input window, operand 0, single buffered']
    #allocation3 [shape = 's32[1]{0}', space=sflag, size = 0x4, scoped, tag = 'scoped memory for _speech_featurizer_forward.1']
    #allocation4 [shape = 'u8[65536]{0}', space=vmem, size = 0x10000, scoped, tag = 'input window, operand 1, single buffered']
    #allocation5 [shape = 's32[1]{0}', space=sflag, size = 0x4, scoped, tag = 'scoped memory for _speech_featurizer_forward.1']
    #allocation6 [shape = 'u8[8192]{0}', space=vmem, size = 0x2000, scoped, tag = 'output window, operand 0, single buffered']
    %8 = vsyncpa [#allocation3], 0
    %9 = vsyncpa [#allocation5], 0
    // Predicated region
    $region2: #{_speech_featurizer_forward.1} parent=1 // pred_check
      _
    $region3: #{_speech_featurizer_forward.1} parent=1 // pred_check_branch
      %11 = sbr.rel (0) target = $region5
    $region4: #{_speech_featurizer_forward.1} parent=1 // pred_region
      %s13 = ssub.s32 256, 32
      %14 = vsyncadd [#allocation3], %s13
      %s15 = sshll.u32 [#allocation2], 4
      %s16 = int_to_ptr.vmem [resolvable:$true] %s15
      %21 = dma.hbm_to_vmem [thread:$0]  %s0, 32, %s16, [#allocation3], 32, 32, 2
    $region5: #{_speech_featurizer_forward.1} parent=1 // pred_fallthru
      _
    // Predicated region
    $region6: #{_speech_featurizer_forward.1} parent=1 // pred_check
      _
    $region7: #{_speech_featurizer_forward.1} parent=1 // pred_check_branch
      %23 = sbr.rel (0) target = $region9
    $region8: #{_speech_featurizer_forward.1} parent=1 // pred_region
      %s25 = ssub.s32 2048, 2048
      %26 = vsyncadd [#allocation5], %s25
      %s27 = sshll.u32 [#allocation4], 4
      %s28 = int_to_ptr.vmem [resolvable:$true] %s27
      %33 = dma.hbm_to_vmem [thread:$0]  %s1, 2048, %s28, [#allocation5], 128, 128, 8
    $region9: #{_speech_featurizer_forward.1} parent=1 // pred_fallthru
      _
    // Predicated region
    $region10: #{_speech_featurizer_forward.1} parent=1 // pred_check
      _
    $region11: #{_speech_featurizer_forward.1} parent=1 // pred_check_branch
      %35 = sbr.rel (0) target = $region13
    $region12: #{_speech_featurizer_forward.1} parent=1 // pred_region
      _
    $region13: #{_speech_featurizer_forward.1} parent=1 // pred_fallthru
      _
    // Predicated region
    $region14: #{_speech_featurizer_forward.1} parent=1 // pred_check
      _
    $region15: #{_speech_featurizer_forward.1} parent=1 // pred_check_branch
      %37 = sbr.rel (0) target = $region17
    $region16: #{_speech_featurizer_forward.1} parent=1 // pred_region
      %38 = dma.done [#allocation3], 256
    $region17: #{_speech_featurizer_forward.1} parent=1 // pred_fallthru
      _
    // Predicated region
    $region18: #{_speech_featurizer_forward.1} parent=1 // pred_check
      _
    $region19: #{_speech_featurizer_forward.1} parent=1 // pred_check_branch
      %40 = sbr.rel (0) target = $region21
    $region20: #{_speech_featurizer_forward.1} parent=1 // pred_region
      %41 = dma.done [#allocation5], 2048
    $region21: #{_speech_featurizer_forward.1} parent=1 // pred_fallthru
      _
    %v43 = vld [vmem:[#allocation2] sm:$0xff]
    %v44 = vld [vmem:[#allocation2 + $0x8] sm:$0xff]
    %v45 = vpack.c.bf16 %v44, %v43
    %v46 = vld [vmem:[#allocation4] sm:$0xff]
    %v47 = vld [vmem:[#allocation4 + $0x8] sm:$0xff]
    %v48 = vld [vmem:[#allocation4 + $0x10] sm:$0xff]
    %v49 = vld [vmem:[#allocation4 + $0x18] sm:$0xff]
    %v50 = vld [vmem:[#allocation4 + $0x20] sm:$0xff]
    %v51 = vld [vmem:[#allocation4 + $0x28] sm:$0xff]
    %v52 = vld [vmem:[#allocation4 + $0x30] sm:$0xff]
    %v53 = vld [vmem:[#allocation4 + $0x38] sm:$0xff]
    %v54 = vld [vmem:[#allocation4 + $0x40] sm:$0xff]
    %v55 = vld [vmem:[#allocation4 + $0x48] sm:$0xff]
    %v56 = vld [vmem:[#allocation4 + $0x50] sm:$0xff]
    %v57 = vld [vmem:[#allocation4 + $0x58] sm:$0xff]
    %v58 = vld [vmem:[#allocation4 + $0x60] sm:$0xff]
    %v59 = vld [vmem:[#allocation4 + $0x68] sm:$0xff]
    %v60 = vld [vmem:[#allocation4 + $0x70] sm:$0xff]
    %v61 = vld [vmem:[#allocation4 + $0x78] sm:$0xff]
    %v62 = vld [vmem:[%s2] sm:$0x3]
    %v64 = vlaneseq
    %v65 = vshrl.u32 %v64, 7
    %v66 = vsub.s32 0, %v65
    %v67 = vrot.slane %v62, %v66
    %v68 = vlaneseq
    %v69 = vshrl.u32 %v68, 7
    %v70 = vsub.s32 1, %v69
    %v71 = vrot.slane %v62, %v70
    %v90 = vunpack.c.l.b16 %v46
    %v91 = vunpack.c.h.b16 %v46
    %v92 = vunpack.c.l.b16 %v47
    %v93 = vunpack.c.h.b16 %v47
    %v94 = vunpack.c.l.b16 %v48
    %v95 = vunpack.c.h.b16 %v48
    %v96 = vunpack.c.l.b16 %v49
    %v97 = vunpack.c.h.b16 %v49
    %v98 = vunpack.c.l.b16 %v50
    %v99 = vunpack.c.h.b16 %v50
    %v100 = vunpack.c.l.b16 %v51
    %v101 = vunpack.c.h.b16 %v51
    %v102 = vunpack.c.l.b16 %v52
    %v103 = vunpack.c.h.b16 %v52
    %v104 = vunpack.c.l.b16 %v53
    %v105 = vunpack.c.h.b16 %v53
    %v106 = vunpack.c.l.b16 %v54
    %v107 = vunpack.c.h.b16 %v54
    %v108 = vunpack.c.l.b16 %v55
    %v109 = vunpack.c.h.b16 %v55
    %v110 = vunpack.c.l.b16 %v56
    %v111 = vunpack.c.h.b16 %v56
    %v112 = vunpack.c.l.b16 %v57
    %v113 = vunpack.c.h.b16 %v57
    %v114 = vunpack.c.l.b16 %v58
    %v115 = vunpack.c.h.b16 %v58
    %v116 = vunpack.c.l.b16 %v59
    %v117 = vunpack.c.h.b16 %v59
    %v118 = vunpack.c.l.b16 %v60
    %v119 = vunpack.c.h.b16 %v60
    %v120 = vunpack.c.l.b16 %v61
    %v121 = vunpack.c.h.b16 %v61
    %v122 = vpack.c.b16 %v92, %v90
    %v123 = vpack.c.b16 %v93, %v91
    %v124 = vpack.c.b16 %v96, %v94
    %v125 = vpack.c.b16 %v97, %v95
    %v126 = vpack.c.b16 %v100, %v98
    %v127 = vpack.c.b16 %v101, %v99
    %v128 = vpack.c.b16 %v104, %v102
    %v129 = vpack.c.b16 %v105, %v103
    %v130 = vpack.c.b16 %v108, %v106
    %v131 = vpack.c.b16 %v109, %v107
    %v132 = vpack.c.b16 %v112, %v110
    %v133 = vpack.c.b16 %v113, %v111
    %v134 = vpack.c.b16 %v116, %v114
    %v135 = vpack.c.b16 %v117, %v115
    %v136 = vpack.c.b16 %v120, %v118
    %v137 = vpack.c.b16 %v121, %v119
    %154 = vmatprep.subr.bf16.mxu0 %v123
    %155 = vmatpush1.bf16.msra.mxu0 %v122
    %156 = vmatprep.subr.bf16.mxu0 %v125
    %157 = vmatpush1.bf16.msra.mxu0 %v124
    %158 = vmatprep.subr.bf16.mxu0 %v127
    %159 = vmatpush1.bf16.msra.mxu0 %v126
    %160 = vmatprep.subr.bf16.mxu0 %v129
    %161 = vmatpush1.bf16.msra.mxu0 %v128
    %162 = vmatprep.subr.bf16.mxu0 %v131
    %163 = vmatpush1.bf16.msra.mxu0 %v130
    %164 = vmatprep.subr.bf16.mxu0 %v133
    %165 = vmatpush1.bf16.msra.mxu0 %v132
    %166 = vmatprep.subr.bf16.mxu0 %v135
    %167 = vmatpush1.bf16.msra.mxu0 %v134
    %168 = vmatprep.subr.bf16.mxu0 %v137
    %169 = vmatpush1.bf16.msra.mxu0 %v136
    %170 = vmatprep.subr.bf16.mxu0 0
    %171 = vmatpush1.bf16.msra.mxu0 0
    %172 = vmatprep.subr.bf16.mxu0 0
    %173 = vmatpush1.bf16.msra.mxu0 0
    %174 = vmatprep.subr.bf16.mxu0 0
    %175 = vmatpush1.bf16.msra.mxu0 0
    %176 = vmatprep.subr.bf16.mxu0 0
    %177 = vmatpush1.bf16.msra.mxu0 0
    %178 = vmatprep.subr.bf16.mxu0 0
    %179 = vmatpush1.bf16.msra.mxu0 0
    %180 = vmatprep.subr.bf16.mxu0 0
    %181 = vmatpush1.bf16.msra.mxu0 0
    %182 = vmatprep.subr.bf16.mxu0 0
    %183 = vmatpush1.bf16.msra.mxu0 0
    %184 = vmatprep.subr.bf16.mxu0 0
    %185 = vmatpush1.bf16.msra.mxu0 0
    %186 = vmatprep.mubr.bf16.mxu0 0
    %187 = vmatmul.mubr.bf16.gmra.mrb[0].mxu0 %v45
    %v188 = vpop.f32.mrb[0].mxu0
    %v189 = vadd.f32 %v67, %v188
    %v190 = vpop.f32.mrb[0].mxu0
    %v191 = vadd.f32 %v71, %v190
    %v192 = vpop.f32.mrb[0].mxu0
    %v193 = vadd.f32 %v67, %v192
    %v194 = vpop.f32.mrb[0].mxu0
    %v195 = vadd.f32 %v71, %v194
    %196 = vdwg.mxu0
    %v197 = vmul.f32 %v189, %v189
    %v198 = vmul.f32 %v191, %v191
    %v199 = vmul.f32 %v193, %v193
    %v200 = vmul.f32 %v195, %v195
    %v201 = vmul.f32 %v189, %v197
    %v202 = vmul.f32 %v191, %v198
    %v203 = vmul.f32 %v193, %v199
    %v204 = vmul.f32 %v195, %v200
    %v205 = vmul.f32 %v201, 0.044715
    %v206 = vmul.f32 %v202, 0.044715
    %v207 = vmul.f32 %v203, 0.044715
    %v208 = vmul.f32 %v204, 0.044715
    %v209 = vadd.f32 %v189, %v205
    %v210 = vadd.f32 %v191, %v206
    %v211 = vadd.f32 %v193, %v207
    %v212 = vadd.f32 %v195, %v208
    %v213 = vmul.f32 %v209, 0.7978846
    %v214 = vmul.f32 %v210, 0.7978846
    %v215 = vmul.f32 %v211, 0.7978846
    %v216 = vmul.f32 %v212, 0.7978846
    %v217 = vtanh.pop %v213
    %v218 = vtanh.pop %v214
    %v219 = vtanh.pop %v215
    %v220 = vtanh.pop %v216
    %v221 = vadd.f32 %v217, 1.0
    %v222 = vadd.f32 %v218, 1.0
    %v223 = vadd.f32 %v219, 1.0
    %v224 = vadd.f32 %v220, 1.0
    %v225 = vmul.f32 %v221, 0.5
    %v226 = vmul.f32 %v222, 0.5
    %v227 = vmul.f32 %v223, 0.5
    %v228 = vmul.f32 %v224, 0.5
    %v229 = vmul.f32 %v189, %v225
    %v230 = vmul.f32 %v191, %v226
    %v231 = vmul.f32 %v193, %v227
    %v232 = vmul.f32 %v195, %v228
    %v233 = vpack.c.bf16 %v231, %v229
    %v234 = vpack.c.bf16 %v232, %v230
    %v237 = vcombine.low %v233, %v234
    %v238 = vcombine.high %v233, %v234
    %v240 = vunpack.c.l.s4 1966171168
    %v241 = vunpack.c.0.s8 %v240
    %v242 = vlaneseq
    %v243 = vshrl.u32 %v242, 7
    %v244 = vsub.s32 %v241, %v243
    %v245 = vrot.slane %v237, %v244
    %v247 = vunpack.c.l.s4 1966171168
    %v248 = vunpack.c.0.s8 %v247
    %v249 = vlaneseq
    %v250 = vshrl.u32 %v249, 7
    %v251 = vsub.s32 %v248, %v250
    %v252 = vrot.slane %v238, %v251
    %v253 = vcombine.high %v245, %v245
    %v254 = vcombine.high %v252, %v252
    %v256 = vunpack.c.l.s4 1966171168
    %v257 = vunpack.c.0.s8 %v256
    %v258 = vlaneseq
    %v259 = vshrl.u32 %v258, 7
    %v260 = vsub.s32 %v257, %v259
    %v261 = vrot.slane %v245, %v260
    %v263 = vunpack.c.l.s4 1966171168
    %v264 = vunpack.c.0.s8 %v263
    %v265 = vlaneseq
    %v266 = vshrl.u32 %v265, 7
    %v267 = vsub.s32 %v264, %v266
    %v268 = vrot.slane %v252, %v267
    %v270 = vunpack.c.l.s4 1966171168
    %v271 = vunpack.c.0.s8 %v270
    %v272 = vlaneseq
    %v273 = vshrl.u32 %v272, 7
    %v274 = vsub.s32 %v271, %v273
    %v275 = vrot.slane %v253, %v274
    %v277 = vunpack.c.l.s4 1966171168
    %v278 = vunpack.c.0.s8 %v277
    %v279 = vlaneseq
    %v280 = vshrl.u32 %v279, 7
    %v281 = vsub.s32 %v278, %v280
    %v282 = vrot.slane %v254, %v281
    %v283 = vcombine.high %v261, %v261
    %v284 = vcombine.high %v268, %v268
    %v285 = vcombine.high %v275, %v275
    %v286 = vcombine.high %v282, %v282
    %295 = vst [vmem:[#allocation6] sm:$0x3] %v261
    %296 = vst [vmem:[#allocation6 + $0x2] sm:$0x3] %v275
    %297 = vst [vmem:[#allocation6 + $0x4] sm:$0x3] %v283
    %298 = vst [vmem:[#allocation6 + $0x6] sm:$0x3] %v285
    %299 = vst [vmem:[#allocation6 + $0x8] sm:$0x3] %v268
    %300 = vst [vmem:[#allocation6 + $0xa] sm:$0x3] %v282
    %301 = vst [vmem:[#allocation6 + $0xc] sm:$0x3] %v284
    %302 = vst [vmem:[#allocation6 + $0xe] sm:$0x3] %v286
    // Predicated region
    $region22: #{_speech_featurizer_forward.1} parent=1 // pred_check
      _
    $region23: #{_speech_featurizer_forward.1} parent=1 // pred_check_branch
      %304 = sbr.rel (0) target = $region25
    $region24: #{_speech_featurizer_forward.1} parent=1 // pred_region
      // Predicated region
      $region26: #{_speech_featurizer_forward.1} parent=24 // pred_check
        _
      $region27: #{_speech_featurizer_forward.1} parent=24 // pred_check_branch
        %306 = sbr.rel (0) target = $region29
      $region28: #{_speech_featurizer_forward.1} parent=24 // pred_region
        // Predicated region
        $region30: #{_speech_featurizer_forward.1} parent=28 // pred_check
          _
        $region31: #{_speech_featurizer_forward.1} parent=28 // pred_check_branch
          %308 = sbr.rel target = $region33
        $region32: #{_speech_featurizer_forward.1} parent=28 // pred_region
          // Predicated region
          $region45: #{_speech_featurizer_forward.1} parent=32 // pred_check
            _
          $region46: #{_speech_featurizer_forward.1} parent=32 // pred_check_branch
            %323 = sbr.rel (0) target = $region48
          $region47: #{_speech_featurizer_forward.1} parent=32 // pred_region
            loop: start=0, step=1, limit=1
            $region49: #{_speech_featurizer_forward.1} parent=47 // loop_pre_header
              _
            $region50: #{_speech_featurizer_forward.1} parent=47 // loop_header
              %s326 = sphi 0, %s330
              %p327 = scmp.ge.s32.totalorder %s326, 1
              %s331 = sphi [#allocation6], [#allocation6]
              %s332 = sphi %s3, %s3
            $region51: #{_speech_featurizer_forward.1} parent=47 // loop_header_branch
              %329 = sbr.rel (%p327) target = $region55
            $region52: #{_speech_featurizer_forward.1} parent=47 // loop_body
              %v333 = vld [vmem:[%s331] sm:$0x3]
              %334 = vst [vmem:[%s332] sm:$0x3] %v333
            $region53: #{_speech_featurizer_forward.1} parent=47 // loop_footer
              %s330 = sadd.s32 1, %s326
            $region54: #{_speech_featurizer_forward.1} parent=47 // loop_footer_branch
              %325 = sbr.rel target = $region50
            $region55: #{_speech_featurizer_forward.1} parent=47 // loop_exit
              _
          $region48: #{_speech_featurizer_forward.1} parent=32 // pred_fallthru
            _
        $region33: #{_speech_featurizer_forward.1} parent=28 // pred_fallthru
          _
        // Predicated region
        $region34: #{_speech_featurizer_forward.1} parent=28 // pred_check
          _
        $region35: #{_speech_featurizer_forward.1} parent=28 // pred_check_branch
          %310 = sbr.rel (0) target = $region37
        $region36: #{_speech_featurizer_forward.1} parent=28 // pred_region
          loop: start=0, step=1, limit=1
          $region38: #{_speech_featurizer_forward.1} parent=36 // loop_pre_header
            _
          $region39: #{_speech_featurizer_forward.1} parent=36 // loop_header
            %s313 = sphi 0, %s317
            %p314 = scmp.ge.s32.totalorder %s313, 1
            %s318 = sphi [#allocation6], [#allocation6]
            %s319 = sphi %s3, %s3
          $region40: #{_speech_featurizer_forward.1} parent=36 // loop_header_branch
            %316 = sbr.rel (%p314) target = $region44
          $region41: #{_speech_featurizer_forward.1} parent=36 // loop_body
            %v320 = vld [vmem:[%s318] sm:$0x3]
            %321 = vst [vmem:[%s319] sm:$0x3] %v320
          $region42: #{_speech_featurizer_forward.1} parent=36 // loop_footer
            %s317 = sadd.s32 1, %s313
          $region43: #{_speech_featurizer_forward.1} parent=36 // loop_footer_branch
            %312 = sbr.rel target = $region39
          $region44: #{_speech_featurizer_forward.1} parent=36 // loop_exit
            _
        $region37: #{_speech_featurizer_forward.1} parent=28 // pred_fallthru
          _
      $region29: #{_speech_featurizer_forward.1} parent=24 // pred_fallthru
        _
      %335 = vnop
    $region25: #{_speech_featurizer_forward.1} parent=1 // pred_fallthru
      _
    // Predicated region
    $region56: #{_speech_featurizer_forward.1} parent=1 // pred_check
      _
    $region57: #{_speech_featurizer_forward.1} parent=1 // pred_check_branch
      %337 = sbr.rel (0) target = $region59
    $region58: #{_speech_featurizer_forward.1} parent=1 // pred_region
      _
    $region59: #{_speech_featurizer_forward.1} parent=1 // pred_fallthru
      _
    %338 = vsyncpa [#allocation3], 1
    %339 = vsyncpa [#allocation5], 1

</llo_original>
